<compile_context>
chip_gen: v5e
topology: v5e:2x2
jax: 0.10.0
libtpu: 0.0.40
codegen_flags: <defaults>
</compile_context>

<pallas_src>
import functools
import math

import jax
import jax.numpy as jnp
from jax import lax
from jax.experimental import pallas as pl
from jax.experimental.pallas import tpu as pltpu

_INV_SQRT2 = 0.7071067811865476
_SQRT_2_OVER_PI = 0.7978845608028654


def _round_up(a, b):
    return ((a + b - 1) // b) * b


def _gelu(h, approximate):
    if approximate:
        return 0.5 * h * (1.0 + jnp.tanh(_SQRT_2_OVER_PI * (h + 0.044715 * h * h * h)))
    # Exact GELU (nn.GELU default): 0.5 * x * (1 + erf(x / sqrt(2)))
    return 0.5 * h * (1.0 + lax.erf(h * _INV_SQRT2))


# --------------------------------- kernels ---------------------------------


def _mlp_kernel_resident(x_ref, w1_ref, b1_ref, w2_ref, b2_ref, o_ref, acc_ref,
                         *, th, n_chunks, mxu_dtype, approximate):
    """Weights fully VMEM-resident (constant block index); loop over H chunks in-kernel."""
    acc_ref[...] = jnp.zeros_like(acc_ref)
    x = x_ref[...].astype(mxu_dtype)

    def chunk(off):
        h = jnp.dot(x, w1_ref[:, pl.ds(off, th)].astype(mxu_dtype),
                    preferred_element_type=jnp.float32)
        h = h + b1_ref[:, pl.ds(off, th)].astype(jnp.float32)
        h = _gelu(h, approximate)
        # Dropout(p=0.0) is the identity.
        acc_ref[...] += jnp.dot(h.astype(mxu_dtype),
                                w2_ref[pl.ds(off, th), :].astype(mxu_dtype),
                                preferred_element_type=jnp.float32)

    if n_chunks <= 16:
        for c in range(n_chunks):        # static offsets: slices are views, zero runtime cost
            chunk(c * th)
    else:
        @pl.loop(0, n_chunks)
        def _(c):
            chunk(pl.multiple_of(c * th, 128))

    o_ref[...] = (acc_ref[...] + b2_ref[...].astype(jnp.float32)).astype(o_ref.dtype)


def _mlp_kernel_streamed(x_ref, w1_ref, b1_ref, w2_ref, b2_ref, o_ref, acc_ref,
                         *, mxu_dtype, approximate):
    """2-D grid: i = row tile ('parallel'), j = hidden chunk ('arbitrary' reduction)."""
    j = pl.program_id(1)

    @pl.when(j == 0)
    def _init():
        acc_ref[...] = jnp.zeros_like(acc_ref)

    h = jnp.dot(x_ref[...].astype(mxu_dtype), w1_ref[...].astype(mxu_dtype),
                preferred_element_type=jnp.float32)
    h = h + b1_ref[...].astype(jnp.float32)
    h = _gelu(h, approximate)
    # Dropout(p=0.0) is the identity.
    acc_ref[...] += jnp.dot(h.astype(mxu_dtype), w2_ref[...].astype(mxu_dtype),
                            preferred_element_type=jnp.float32)

    @pl.when(j == pl.num_programs(1) - 1)
    def _finalize():
        o_ref[...] = (acc_ref[...] + b2_ref[...].astype(jnp.float32)).astype(o_ref.dtype)


# --------------------------------- wrapper ----------------------------------


def _hw_info():
    """(vmem_capacity, usable budget, #tensorcores, device_kind) with safe fallbacks."""
    vmem_cap = 128 << 20
    try:
        info = pltpu.get_tpu_info()
        vmem_cap = int(getattr(info, "vmem_capacity_bytes", vmem_cap)) or vmem_cap
    except Exception:
        pass
    kind = ""
    try:
        kind = jax.devices()[0].device_kind.lower()
    except Exception:
        pass
    num_tc = 2 if (vmem_cap <= (64 << 20) or "v7" in kind or "7x" in kind) else 1
    if vmem_cap <= (64 << 20):            # v7x-class (64 MiB / TensorCore)
        budget = int(vmem_cap * 0.82)     # ~52 MiB; leave headroom for Mosaic scratch
    else:                                 # v5e / v6e (128 MiB)
        budget = int(vmem_cap * 0.85)     # ~108 MiB
    return vmem_cap, budget, num_tc, kind


def _chunk_sizes(h_p, th_cap):
    """Multiples of 128 that divide h_p, descending, capped at th_cap (always non-empty)."""
    n = h_p // 128
    out = []
    for d in range(min(max(th_cap // 128, 1), n), 0, -1):
        if n % d == 0:
            out.append(128 * d)
    return out


def mlp_pallas(x, w1, b1, w2, b2, *, tm=None, th=None, use_bf16_mxu=False,
               approximate_gelu=False, force_streamed=False):
    """Fused MLP forward.  x: (..., D_in); w1: (D_in, H); b1: (H,); w2: (H, D_out); b2: (D_out,).

    Weights are stored transposed w.r.t. torch.nn.Linear so the kernel computes x @ W + b.
    Dropout(p=0.0) is an identity and emits no ops.
    """
    *lead, D_in = x.shape
    H = w1.shape[1]
    D_out = w2.shape[1]
    M = 1
    for s in lead:
        M *= int(s)

    out_dtype = x.dtype
    mxu_dtype = jnp.bfloat16 if use_bf16_mxu else x.dtype
    itm = jnp.dtype(mxu_dtype).itemsize
    out_itm = jnp.dtype(out_dtype).itemsize
    sub = 8 if itm >= 4 else 16

    vmem_cap, budget, num_tc, kind = _hw_info()

    # ---- lane-align feature dims (pads emitted only when actually needed) ----
    D_in_p, H_p, D_out_p = (_round_up(d, 128) for d in (D_in, H, D_out))

    x2d = x.reshape(M, D_in)
    if x2d.dtype != mxu_dtype:
        x2d = x2d.astype(mxu_dtype)
    if D_in_p != D_in:
        x2d = jnp.pad(x2d, ((0, 0), (0, D_in_p - D_in)))

    w1_p = w1.astype(mxu_dtype) if w1.dtype != mxu_dtype else w1
    if (D_in_p, H_p) != tuple(w1.shape):
        w1_p = jnp.pad(w1_p, ((0, D_in_p - D_in), (0, H_p - H)))
    w2_p = w2.astype(mxu_dtype) if w2.dtype != mxu_dtype else w2
    if (H_p, D_out_p) != tuple(w2.shape):
        w2_p = jnp.pad(w2_p, ((0, H_p - H), (0, D_out_p - D_out)))
    b1_p = (jnp.pad(b1, (0, H_p - H)) if H_p != H else b1).reshape(1, H_p)
    b2_p = (jnp.pad(b2, (0, D_out_p - D_out)) if D_out_p != D_out else b2).reshape(1, D_out_p)

    # ---- row-tile candidates (generation-aware defaults) ----
    rows_cap = _round_up(M, sub)                         # one tile covering every row
    if tm is None:
        if vmem_cap <= (64 << 20):                       # v7x-class
            tm_pref = 512
        elif "v5" in kind:                               # v5e
            tm_pref = 512
        else:                                            # v6e-class / unknown 128-MiB part
            tm_pref = 1024 if itm <= 2 else 512
        tm_cap = rows_cap
        if num_tc >= 2 and M > sub:
            # Keep >=2 row tiles so the 'parallel' axis feeds both TensorCores.
            tm_cap = min(tm_cap, _round_up(-(-M // 2), sub))
    else:
        tm_pref = max(sub, _round_up(int(tm), sub))
        tm_cap = rows_cap

    cands, t = [], _round_up(tm_pref, sub)
    while True:
        cands.append(max(sub, min(t, tm_cap)))
        if t <= sub:
            break
        t = max(sub, _round_up(t // 2, sub))
    cands = sorted(set(cands), reverse=True)

    # ---- hidden-chunk candidates: multiples of 128 dividing H_p ----
    if th is not None:
        th_cap = max(128, int(th))
    else:
        th_cap = 512
        if vmem_cap <= (64 << 20) and max(D_in_p, D_out_p) >= 8192:
            th_cap = 256                                  # v7x: halve streamed weight chunks
    th_cap = min(th_cap, H_p)
    th_list = _chunk_sizes(H_p, th_cap)

    # ---- VMEM need estimates (conservative: default double-buffering everywhere) ----
    w_bytes_full = (D_in_p * H_p + H_p * D_out_p) * itm

    def _need_common(tm_, th_):
        n = 2 * tm_ * D_in_p * itm                        # x tile
        n += 2 * tm_ * D_out_p * out_itm                  # out tile
        n += tm_ * D_out_p * 4                            # f32 accumulator scratch
        n += 2 * 8 * D_out_p * b2_p.dtype.itemsize        # b2
        n += 3 * tm_ * th_ * 4                            # f32 GELU intermediate + temps
        return n

    def need_resident(tm_, th_):
        n = _need_common(tm_, th_)
        n += 2 * w_bytes_full                             # full W1/W2 (2 buffers, conservative)
        n += 2 * 8 * H_p * b1_p.dtype.itemsize            # b1 resident
        n += (D_in_p + D_out_p) * th_ * itm               # chunk-slice temporaries
        return n + (2 << 20)

    def need_streamed(tm_, th_):
        n = _need_common(tm_, th_)
        n += 2 * (D_in_p + D_out_p) * th_ * itm           # W1/W2 chunks (double-buffered)
        n += 2 * 8 * th_ * b1_p.dtype.itemsize            # b1 chunk
        return n + (2 << 20)

    # ---- plan selection: prefer weights-resident (biggest HBM-traffic win) ----
    plan = None
    if not force_streamed:
        th_res = th_list[0]
        min_tm_res = min(256, tm_cap)
        for tm_c in cands:
            if tm_c < min_tm_res:
                break
            if need_resident(tm_c, th_res) <= budget:
                plan = ("resident", tm_c, th_res)
                break
    if plan is None:
        for tm_c in cands:
            for th_c in th_list:
                if need_streamed(tm_c, th_c) <= budget:
                    plan = ("streamed", tm_c, th_c)
                    break
            if plan is not None:
                break
    if plan is None:
        plan = ("streamed", cands[-1], th_list[-1])       # last resort: smallest tiles

    mode, tm_sel, th_sel = plan
    grid_m = pl.cdiv(M, tm_sel)

    need_fn = need_resident if mode == "resident" else need_streamed
    vmem_limit = int(min(max(budget, need_fn(tm_sel, th_sel) + (4 << 20)),
                         int(vmem_cap * 0.92)))

    # ---- advisory cost estimate ----
    try:
        w_all = w_bytes_full + (H_p + D_out_p) * 4
        cost = pl.CostEstimate(
            flops=2 * M * H_p * (D_in_p + D_out_p),
            transcendentals=M * H_p,
            bytes_accessed=(M * D_in_p * itm + M * D_out_p * out_itm
                            + w_all * (1 if mode == "resident" else int(grid_m))),
        )
    except Exception:
        cost = None

    if mode == "resident":
        kernel = functools.partial(
            _mlp_kernel_resident, th=th_sel, n_chunks=H_p // th_sel,
            mxu_dtype=mxu_dtype, approximate=approximate_gelu)
        grid = (grid_m,)
        in_specs = [
            pl.BlockSpec((tm_sel, D_in_p), lambda i: (i, 0)),
            pl.BlockSpec((D_in_p, H_p), lambda i: (0, 0)),     # constant index: DMA'd once
            pl.BlockSpec((1, H_p), lambda i: (0, 0)),
            pl.BlockSpec((H_p, D_out_p), lambda i: (0, 0)),    # constant index: DMA'd once
            pl.BlockSpec((1, D_out_p), lambda i: (0, 0)),
        ]
        out_specs = pl.BlockSpec((tm_sel, D_out_p), lambda i: (i, 0))
        dims = ("parallel",)
    else:
        kernel = functools.partial(
            _mlp_kernel_streamed, mxu_dtype=mxu_dtype, approximate=approximate_gelu)
        grid = (grid_m, H_p // th_sel)
        # x / out / b2 have constant block index along j (re-DMA skipped by the pipeline);
        # W1 / b1 / W2 vary every j step and rely on default double-buffering to hide DMA.
        in_specs = [
            pl.BlockSpec((tm_sel, D_in_p), lambda i, j: (i, 0)),
            pl.BlockSpec((D_in_p, th_sel), lambda i, j: (0, j)),
            pl.BlockSpec((1, th_sel), lambda i, j: (0, j)),
            pl.BlockSpec((th_sel, D_out_p), lambda i, j: (j, 0)),
            pl.BlockSpec((1, D_out_p), lambda i, j: (0, 0)),
        ]
        out_specs = pl.BlockSpec((tm_sel, D_out_p), lambda i, j: (i, 0))
        dims = ("parallel", "arbitrary")

    out2d = pl.pallas_call(
        kernel,
        out_shape=jax.ShapeDtypeStruct((M, D_out_p), out_dtype),
        grid_spec=pltpu.PrefetchScalarGridSpec(
            num_scalar_prefetch=0,
            grid=grid,
            in_specs=in_specs,
            out_specs=out_specs,
            scratch_shapes=[pltpu.VMEM((tm_sel, D_out_p), jnp.float32)],
        ),
        compiler_params=pltpu.CompilerParams(
            dimension_semantics=dims,
            vmem_limit_bytes=vmem_limit,
        ),
        cost_estimate=cost,
    )(x2d, w1_p, b1_p, w2_p, b2_p)

    out = out2d if D_out_p == D_out else out2d[:, :D_out]
    return out.reshape(*lead, D_out)


# --------------------------------- reference & tests ---------------------------------


def _reference_mlp(x, w1, b1, w2, b2, approximate=False):
    xf = x.astype(jnp.float32)
    h = xf @ w1.astype(jnp.float32) + b1.astype(jnp.float32)
    h = _gelu(h, approximate)
    o = h @ w2.astype(jnp.float32) + b2.astype(jnp.float32)
    return o.astype(x.dtype)


def _run_case(name, key, B, N, d_in, d_hidden, d_out, dtype, tol, **kw):
    kx, k1, k2, k3, k4 = jax.random.split(key, 5)
    lim1 = 1.0 / math.sqrt(d_in)
    lim2 = 1.0 / math.sqrt(d_hidden)
    x = jax.random.normal(kx, (B, N, d_in), dtype=jnp.float32)
    w1 = jax.random.uniform(k1, (d_in, d_hidden), minval=-lim1, maxval=lim1, dtype=jnp.float32)
    b1 = jax.random.uniform(k2, (d_hidden,), minval=-lim1, maxval=lim1, dtype=jnp.float32)
    w2 = jax.random.uniform(k3, (d_hidden, d_out), minval=-lim2, maxval=lim2, dtype=jnp.float32)
    b2 = jax.random.uniform(k4, (d_out,), minval=-lim2, maxval=lim2, dtype=jnp.float32)
    x, w1, b1, w2, b2 = (a.astype(dtype) for a in (x, w1, b1, w2, b2))

    out = jax.block_until_ready(mlp_pallas(x, w1, b1, w2, b2, **kw))
    ref = _reference_mlp(x, w1, b1, w2, b2)
    assert out.shape == (B, N, d_out), f"{name}: bad shape {out.shape}"
    err = float(jnp.max(jnp.abs(out.astype(jnp.float32) - ref.astype(jnp.float32))))
    assert err <= tol, f"{name}: max abs err {err:.3e} > {tol}"


if __name__ == "__main__":
    root = jax.random.PRNGKey(0)
    case_keys = jax.random.split(root, 3)

    # 1) Default path: weights VMEM-resident, auto tiling, exact (erf) GELU.
    _run_case("resident_f32", case_keys[0], B=2, N=8, d_in=32, d_hidden=64, d_out=32,
              dtype=jnp.float32, tol=1e-2)

    # 2) Streamed-weights path (forced): 2-D grid with hidden-dim accumulator,
    #    partial last row tile and non-128-aligned feature dims.
    _run_case("streamed_f32", case_keys[1], B=2, N=9, d_in=48, d_hidden=320, d_out=40,
              dtype=jnp.float32, tol=1e-2, tm=8, th=128, force_streamed=True)

    # 3) bf16 path (bf16 MXU operands, f32 accumulation; looser tolerance since the
    #    GELU output is rounded to bf16 before fc2 — intentional for MXU throughput).
    _run_case("resident_bf16", case_keys[2], B=2, N=8, d_in=32, d_hidden=64, d_out=32,
              dtype=jnp.bfloat16, tol=1e-1)

    print("KERNEL_OK")
</pallas_src>

<mosaic_0001>
module attributes {stable_mosaic.version = 11 : i64} {
  func.func @_mlp_kernel_resident(%arg0: i32, %arg1: memref<16x128xf32, #tpu.memory_space<vmem>>, %arg2: memref<128x128xf32, #tpu.memory_space<vmem>>, %arg3: memref<1x128xf32, #tpu.memory_space<vmem>>, %arg4: memref<128x128xf32, #tpu.memory_space<vmem>>, %arg5: memref<1x128xf32, #tpu.memory_space<vmem>>, %arg6: memref<16x128xf32, #tpu.memory_space<vmem>>, %arg7: memref<16x128xf32, #tpu.memory_space<vmem>>) attributes {dimension_semantics = [#tpu.dimension_semantics<parallel>], iteration_bounds = array<i64: 1>, scalar_prefetch = 0 : i64, scratch_operands = 1 : i64, tpu.core_type = #tpu.core_type<tc>, window_params = [{transform_indices = @transform_0, window_bounds = array<i64: 16, 128>}, {pipeline_mode = #tpu.pipeline_mode<synchronous>, transform_indices = @transform_1, window_bounds = array<i64: 128, 128>}, {pipeline_mode = #tpu.pipeline_mode<synchronous>, transform_indices = @transform_2, window_bounds = array<i64: 1, 128>}, {pipeline_mode = #tpu.pipeline_mode<synchronous>, transform_indices = @transform_3, window_bounds = array<i64: 128, 128>}, {pipeline_mode = #tpu.pipeline_mode<synchronous>, transform_indices = @transform_4, window_bounds = array<i64: 1, 128>}, {transform_indices = @transform_5, window_bounds = array<i64: 16, 128>}]} {
    %cst = arith.constant 0.000000e+00 : f32
    %0 = vector.broadcast %cst : f32 to vector<16x128xf32>
    %c0 = arith.constant 0 : index
    %c0_0 = arith.constant 0 : index
    %1 = vector.load %arg7[%c0, %c0_0] : memref<16x128xf32, #tpu.memory_space<vmem>>, vector<16x128xf32>
    tpu.vector_store %arg7[%c0, %c0_0], %0 {strides = array<i32>} : memref<16x128xf32, #tpu.memory_space<vmem>>, vector<16x128xf32>,
    %c0_1 = arith.constant 0 : index
    %c0_2 = arith.constant 0 : index
    %2 = vector.load %arg1[%c0_1, %c0_2] : memref<16x128xf32, #tpu.memory_space<vmem>>, vector<16x128xf32>
    %c0_3 = arith.constant 0 : index
    %c0_4 = arith.constant 0 : index
    %3 = vector.load %arg2[%c0_3, %c0_4] : memref<128x128xf32, #tpu.memory_space<vmem>>, vector<128x128xf32>
    %cst_5 = arith.constant dense<0.000000e+00> : vector<16x128xf32>
    %4 = tpu.matmul %2, %3, %cst_5 {dimension_numbers = #tpu.dot_dimension_numbers<[1], [0], [0], [1], [0, 0, 1, 1], [], []>} : vector<16x128xf32>, vector<128x128xf32>, vector<16x128xf32> -> vector<16x128xf32>
    %c0_6 = arith.constant 0 : index
    %c0_7 = arith.constant 0 : index
    %5 = vector.load %arg3[%c0_6, %c0_7] : memref<1x128xf32, #tpu.memory_space<vmem>>, vector<1x128xf32>
    %6 = vector.broadcast %5 : vector<1x128xf32> to vector<16x128xf32>
    %7 = arith.addf %4, %6 : vector<16x128xf32>
    %cst_8 = arith.constant 5.000000e-01 : f32
    %8 = vector.broadcast %cst_8 : f32 to vector<16x128xf32>
    %9 = arith.mulf %8, %7 : vector<16x128xf32>
    %cst_9 = arith.constant 0.707106769 : f32
    %10 = vector.broadcast %cst_9 : f32 to vector<16x128xf32>
    %11 = arith.mulf %7, %10 : vector<16x128xf32>
    %12 = math.erf %11 : vector<16x128xf32>
    %cst_10 = arith.constant 1.000000e+00 : f32
    %13 = vector.broadcast %cst_10 : f32 to vector<16x128xf32>
    %14 = arith.addf %13, %12 : vector<16x128xf32>
    %15 = arith.mulf %9, %14 : vector<16x128xf32>
    %c0_11 = arith.constant 0 : index
    %c0_12 = arith.constant 0 : index
    %16 = vector.load %arg7[%c0_11, %c0_12] : memref<16x128xf32, #tpu.memory_space<vmem>>, vector<16x128xf32>
    %c0_13 = arith.constant 0 : index
    %c0_14 = arith.constant 0 : index
    %17 = vector.load %arg4[%c0_13, %c0_14] : memref<128x128xf32, #tpu.memory_space<vmem>>, vector<128x128xf32>
    %cst_15 = arith.constant dense<0.000000e+00> : vector<16x128xf32>
    %18 = tpu.matmul %15, %17, %cst_15 {dimension_numbers = #tpu.dot_dimension_numbers<[1], [0], [0], [1], [0, 0, 1, 1], [], []>} : vector<16x128xf32>, vector<128x128xf32>, vector<16x128xf32> -> vector<16x128xf32>
    %19 = arith.addf %16, %18 : vector<16x128xf32>
    %c0_16 = arith.constant 0 : index
    %c0_17 = arith.constant 0 : index
    %20 = vector.load %arg7[%c0_16, %c0_17] : memref<16x128xf32, #tpu.memory_space<vmem>>, vector<16x128xf32>
    tpu.vector_store %arg7[%c0_16, %c0_17], %19 {strides = array<i32>} : memref<16x128xf32, #tpu.memory_space<vmem>>, vector<16x128xf32>,
    %c0_18 = arith.constant 0 : index
    %c0_19 = arith.constant 0 : index
    %21 = vector.load %arg7[%c0_18, %c0_19] : memref<16x128xf32, #tpu.memory_space<vmem>>, vector<16x128xf32>
    %c0_20 = arith.constant 0 : index
    %c0_21 = arith.constant 0 : index
    %22 = vector.load %arg5[%c0_20, %c0_21] : memref<1x128xf32, #tpu.memory_space<vmem>>, vector<1x128xf32>
    %23 = vector.broadcast %22 : vector<1x128xf32> to vector<16x128xf32>
    %24 = arith.addf %21, %23 : vector<16x128xf32>
    %c0_22 = arith.constant 0 : index
    %c0_23 = arith.constant 0 : index
    %25 = vector.load %arg6[%c0_22, %c0_23] : memref<16x128xf32, #tpu.memory_space<vmem>>, vector<16x128xf32>
    tpu.vector_store %arg6[%c0_22, %c0_23], %24 {strides = array<i32>} : memref<16x128xf32, #tpu.memory_space<vmem>>, vector<16x128xf32>,
    return
  }
  func.func @transform_0(%arg0: i32) -> (i32, i32) {
    %c0_i32 = arith.constant 0 : i32
    %c0_i32_0 = arith.constant 0 : i32
    return %arg0, %c0_i32 : i32, i32
  }
  func.func @transform_1(%arg0: i32) -> (i32, i32) {
    %c0_i32 = arith.constant 0 : i32
    %c0_i32_0 = arith.constant 0 : i32
    %c0_i32_1 = arith.constant 0 : i32
    return %c0_i32, %c0_i32_0 : i32, i32
  }
  func.func @transform_2(%arg0: i32) -> (i32, i32) {
    %c0_i32 = arith.constant 0 : i32
    %c0_i32_0 = arith.constant 0 : i32
    %c0_i32_1 = arith.constant 0 : i32
    return %c0_i32, %c0_i32_0 : i32, i32
  }
  func.func @transform_3(%arg0: i32) -> (i32, i32) {
    %c0_i32 = arith.constant 0 : i32
    %c0_i32_0 = arith.constant 0 : i32
    %c0_i32_1 = arith.constant 0 : i32
    return %c0_i32, %c0_i32_0 : i32, i32
  }
  func.func @transform_4(%arg0: i32) -> (i32, i32) {
    %c0_i32 = arith.constant 0 : i32
    %c0_i32_0 = arith.constant 0 : i32
    %c0_i32_1 = arith.constant 0 : i32
    return %c0_i32, %c0_i32_0 : i32, i32
  }
  func.func @transform_5(%arg0: i32) -> (i32, i32) {
    %c0_i32 = arith.constant 0 : i32
    %c0_i32_0 = arith.constant 0 : i32
    return %arg0, %c0_i32 : i32, i32
  }
}

</mosaic_0001>

<llo_original>
// kernel: tpu_custom_call.1
$region0: #{tpu_custom_call.1}
  #allocation0 [shape = 'u32[]', space=smem, size = 0x4, offset = 0x4, fixed_abs, tag = 'smem constant byte address 0x4 - core index']
  #allocation1 [shape = 'u32[72,128]{1,0:T(1,128)}', space=vmem, size = 0x9000, scoped, tag = 'internal scratch']
  #allocation2 [shape = 'f32[16,128]{1,0:T(8,128)}', space=vmem, size = 0x2000, scoped, tag = 'scratch operand']
  %s0 = inlined_call_operand.hbm [shape: f32[16,128], index: 0, kind: input, shape index: {}]
  %s1 = inlined_call_operand.hbm [shape: f32[128,128], index: 1, kind: input, shape index: {}]
  %s2 = inlined_call_operand.vmem [shape: f32[1,128], index: 2, kind: input, shape index: {}]
  %s3 = inlined_call_operand.hbm [shape: f32[128,128], index: 3, kind: input, shape index: {}]
  %s4 = inlined_call_operand.vmem [shape: f32[1,128], index: 4, kind: input, shape index: {}]
  %s5 = inlined_call_operand.hbm [shape: f32[16,128], index: 5, kind: output, shape index: {}]
  %s6 = sld [smem:[#allocation0]]
  $region42: #{tpu_custom_call.1} parent=0
    _
  %s8 = ssub.s32 1, %s6
  %s9 = scalar_select 0, %s8, %s6
  $region1: #{tpu_custom_call.1} parent=0
    #allocation3 [shape = 'u8[8192]{0}', space=vmem, size = 0x2000, scoped, tag = 'input window, operand 0, single buffered']
    #allocation4 [shape = 's32[1]{0}', space=sflag, size = 0x4, scoped, tag = 'scoped memory for tpu_custom_call.1']
    #allocation5 [shape = 's32[1]{0}', space=sflag, size = 0x4, scoped, tag = 'scoped memory for tpu_custom_call.1']
    #allocation6 [shape = 'u8[65536]{0}', space=vmem, size = 0x10000, scoped, tag = 'input window, operand 1, single buffered']
    #allocation7 [shape = 's32[1]{0}', space=sflag, size = 0x4, scoped, tag = 'scoped memory for tpu_custom_call.1']
    #allocation8 [shape = 'u8[65536]{0}', space=vmem, size = 0x10000, scoped, tag = 'input window, operand 3, single buffered']
    #allocation9 [shape = 'u8[8192]{0}', space=vmem, size = 0x2000, scoped, tag = 'output window, operand 0, single buffered']
    %10 = vsyncpa [#allocation4], 0
    %11 = vsyncpa [#allocation7], 0
    %12 = vsyncpa [#allocation5], 0
    // Predicated region
    $region2: #{tpu_custom_call.1} parent=1 // pred_check
      _
    $region3: #{tpu_custom_call.1} parent=1 // pred_check_branch
      %14 = sbr.rel (0) target = $region5
    $region4: #{tpu_custom_call.1} parent=1 // pred_region
      %16 = vsyncadd [#allocation4], 0
      %s17 = sshll.u32 %s0, 4
      %s18 = int_to_ptr.hbm [resolvable:$true] %s17
      %s19 = sshll.u32 [#allocation3], 4
      %s20 = int_to_ptr.vmem [resolvable:$true] %s19
      %25 = dma.hbm_to_vmem [thread:$0]  %s18, 256, %s20, [#allocation4], 128, 128, 8
    $region5: #{tpu_custom_call.1} parent=1 // pred_fallthru
      _
    // Predicated region
    $region6: #{tpu_custom_call.1} parent=1 // pred_check
      _
    $region7: #{tpu_custom_call.1} parent=1 // pred_check_branch
      %27 = sbr.rel (0) target = $region9
    $region8: #{tpu_custom_call.1} parent=1 // pred_region
      %29 = vsyncadd [#allocation7], 0
      %s30 = sshll.u32 %s1, 4
      %s31 = int_to_ptr.hbm [resolvable:$true] %s30
      %s32 = sshll.u32 [#allocation6], 4
      %s33 = int_to_ptr.vmem [resolvable:$true] %s32
      %38 = dma.hbm_to_vmem [thread:$0]  %s31, 2048, %s33, [#allocation7], 128, 128, 8
    $region9: #{tpu_custom_call.1} parent=1 // pred_fallthru
      _
    // Predicated region
    $region10: #{tpu_custom_call.1} parent=1 // pred_check
      _
    $region11: #{tpu_custom_call.1} parent=1 // pred_check_branch
      %40 = sbr.rel (0) target = $region13
    $region12: #{tpu_custom_call.1} parent=1 // pred_region
      _
    $region13: #{tpu_custom_call.1} parent=1 // pred_fallthru
      _
    // Predicated region
    $region14: #{tpu_custom_call.1} parent=1 // pred_check
      _
    $region15: #{tpu_custom_call.1} parent=1 // pred_check_branch
      %42 = sbr.rel (0) target = $region17
    $region16: #{tpu_custom_call.1} parent=1 // pred_region
      %44 = vsyncadd [#allocation7], 0
      %s45 = sshll.u32 %s3, 4
      %s46 = int_to_ptr.hbm [resolvable:$true] %s45
      %s47 = sshll.u32 [#allocation8], 4
      %s48 = int_to_ptr.vmem [resolvable:$true] %s47
      %53 = dma.hbm_to_vmem [thread:$0]  %s46, 2048, %s48, [#allocation7], 128, 128, 8
    $region17: #{tpu_custom_call.1} parent=1 // pred_fallthru
      _
    // Predicated region
    $region18: #{tpu_custom_call.1} parent=1 // pred_check
      _
    $region19: #{tpu_custom_call.1} parent=1 // pred_check_branch
      %55 = sbr.rel (0) target = $region21
    $region20: #{tpu_custom_call.1} parent=1 // pred_region
      _
    $region21: #{tpu_custom_call.1} parent=1 // pred_fallthru
      _
    // Predicated region
    $region22: #{tpu_custom_call.1} parent=1 // pred_check
      _
    $region23: #{tpu_custom_call.1} parent=1 // pred_check_branch
      %57 = sbr.rel (0) target = $region25
    $region24: #{tpu_custom_call.1} parent=1 // pred_region
      %59 = dma.done [#allocation4], 256
    $region25: #{tpu_custom_call.1} parent=1 // pred_fallthru
      _
    // Predicated region
    $region26: #{tpu_custom_call.1} parent=1 // pred_check
      _
    $region27: #{tpu_custom_call.1} parent=1 // pred_check_branch
      %61 = sbr.rel (0) target = $region29
    $region28: #{tpu_custom_call.1} parent=1 // pred_region
      %63 = dma.done [#allocation7], 2048
    $region29: #{tpu_custom_call.1} parent=1 // pred_fallthru
      _
    // Predicated region
    $region30: #{tpu_custom_call.1} parent=1 // pred_check
      _
    $region31: #{tpu_custom_call.1} parent=1 // pred_check_branch
      %65 = sbr.rel (0) target = $region33
    $region32: #{tpu_custom_call.1} parent=1 // pred_region
      %67 = dma.done [#allocation7], 2048
    $region33: #{tpu_custom_call.1} parent=1 // pred_fallthru
      _
    %68 = vst [vmem:[#allocation2] sm:$0xff] 0.0
    %69 = vst [vmem:[#allocation2 + $0x8] sm:$0xff] 0.0
    %v70 = vld [vmem:[#allocation3] sm:$0xff]
    %v71 = vld [vmem:[#allocation3 + $0x8] sm:$0xff]
    %v72 = vld [vmem:[#allocation6] sm:$0xff]
    %v73 = vld [vmem:[#allocation6 + $0x8] sm:$0xff]
    %v74 = vld [vmem:[#allocation6 + $0x10] sm:$0xff]
    %v75 = vld [vmem:[#allocation6 + $0x18] sm:$0xff]
    %v76 = vld [vmem:[#allocation6 + $0x20] sm:$0xff]
    %v77 = vld [vmem:[#allocation6 + $0x28] sm:$0xff]
    %v78 = vld [vmem:[#allocation6 + $0x30] sm:$0xff]
    %v79 = vld [vmem:[#allocation6 + $0x38] sm:$0xff]
    %v80 = vld [vmem:[#allocation6 + $0x40] sm:$0xff]
    %v81 = vld [vmem:[#allocation6 + $0x48] sm:$0xff]
    %v82 = vld [vmem:[#allocation6 + $0x50] sm:$0xff]
    %v83 = vld [vmem:[#allocation6 + $0x58] sm:$0xff]
    %v84 = vld [vmem:[#allocation6 + $0x60] sm:$0xff]
    %v85 = vld [vmem:[#allocation6 + $0x68] sm:$0xff]
    %v86 = vld [vmem:[#allocation6 + $0x70] sm:$0xff]
    %v87 = vld [vmem:[#allocation6 + $0x78] sm:$0xff]
    %v88 = vld [vmem:[%s2] sm:$0x1]
    %v90 = vperm.slane %v88, 0
    %92 = vmatpush.msra.mxu0 %v87
    %93 = vmatpush.msra.mxu0 %v86
    %94 = vmatpush.msra.mxu0 %v85
    %95 = vmatpush.msra.mxu0 %v84
    %96 = vmatpush.msra.mxu0 %v83
    %97 = vmatpush.msra.mxu0 %v82
    %98 = vmatpush.msra.mxu0 %v81
    %99 = vmatpush.msra.mxu0 %v80
    %100 = vmatpush.msra.mxu0 %v79
    %101 = vmatpush.msra.mxu0 %v78
    %102 = vmatpush.msra.mxu0 %v77
    %103 = vmatpush.msra.mxu0 %v76
    %104 = vmatpush.msra.mxu0 %v75
    %105 = vmatpush.msra.mxu0 %v74
    %106 = vmatpush.msra.mxu0 %v73
    %107 = vmatpush.msra.mxu0 %v72
    %108 = vmatmul.f32.gmra.mxu0 %v70
    %v109 = vpop.f32.mrf.mxu0
    %v110 = vadd.f32 %v90, %v109
    %111 = vmatmul.f32.gmra.mxu0 %v71
    %v112 = vpop.f32.mrf.mxu0
    %v113 = vadd.f32 %v90, %v112
    %114 = vdwg.mxu0
    %v115 = vmul.f32 %v110, 0.5
    %v116 = vmul.f32 %v113, 0.5
    %v117 = vmul.f32 %v110, 0.70710677
    %v118 = vmul.f32 %v113, 0.70710677
    %v119 = vmul.f32 %v117, %v117
    %v120 = vmin.f32 16.0, %v119
    %v121 = vmul.f32 %v120, 2.1237322e-06
    %v122 = vadd.f32 %v121, 0.00028619796
    %v123 = vmul.f32 %v120, %v122
    %v124 = vadd.f32 %v123, 0.0036580483
    %v125 = vmul.f32 %v120, %v124
    %v126 = vadd.f32 %v125, 0.05243302
    %v127 = vmul.f32 %v120, %v126
    %v128 = vadd.f32 %v127, 0.18741608
    %v129 = vmul.f32 %v120, %v128
    %v130 = vadd.f32 %v129, 1.1283791
    %v131 = vmul.f32 %v117, %v130
    %v132 = vmul.f32 %v120, 3.8918573e-05
    %v133 = vadd.f32 %v132, 0.001143296
    %v134 = vmul.f32 %v120, %v133
    %v135 = vadd.f32 %v134, 0.014752088
    %v136 = vmul.f32 %v120, %v135
    %v137 = vadd.f32 %v136, 0.112945676
    %v138 = vmul.f32 %v120, %v137
    %v139 = vadd.f32 %v138, 0.4994258
    %v140 = vmul.f32 %v120, %v139
    %v141 = vadd.f32 %v140, 1.0
    %v142 = vrcp.pop %v141
    %v143 = vmul.f32 %v141, %v142
    %v144 = vsub.f32 1.0, %v143
    %v145 = vmul.f32 %v142, %v144
    %v146 = vadd.f32 %v142, %v145
    %vm147 = vweird.f32 %v141
    %vm148 = vweird.f32 %v142
    %vm149 = vmor %vm147, %vm148
    %v150 = vsel %vm149, %v142, %v146
    %v151 = vand.u32 2147483647, %v141
    %vm152 = vcmp.eq.f32.partialorder %v151, 8.507059e+37
    %v153 = vand.u32 %v141, 2147483648
    %v154 = vor.u32 1.1754944e-38, %v153
    %v155 = vsel %vm152, %v154, %v150
    %v156 = vmul.f32 %v131, %v155
    %v157 = vmin.f32 %v156, 1.0
    %v158 = vmax.f32 %v157, -1.0
    %v159 = vmul.f32 %v118, %v118
    %v160 = vmin.f32 16.0, %v159
    %v161 = vmul.f32 %v160, 2.1237322e-06
    %v162 = vadd.f32 %v161, 0.00028619796
    %v163 = vmul.f32 %v160, %v162
    %v164 = vadd.f32 %v163, 0.0036580483
    %v165 = vmul.f32 %v160, %v164
    %v166 = vadd.f32 %v165, 0.05243302
    %v167 = vmul.f32 %v160, %v166
    %v168 = vadd.f32 %v167, 0.18741608
    %v169 = vmul.f32 %v160, %v168
    %v170 = vadd.f32 %v169, 1.1283791
    %v171 = vmul.f32 %v118, %v170
    %v172 = vmul.f32 %v160, 3.8918573e-05
    %v173 = vadd.f32 %v172, 0.001143296
    %v174 = vmul.f32 %v160, %v173
    %v175 = vadd.f32 %v174, 0.014752088
    %v176 = vmul.f32 %v160, %v175
    %v177 = vadd.f32 %v176, 0.112945676
    %v178 = vmul.f32 %v160, %v177
    %v179 = vadd.f32 %v178, 0.4994258
    %v180 = vmul.f32 %v160, %v179
    %v181 = vadd.f32 %v180, 1.0
    %v182 = vrcp.pop %v181
    %v183 = vmul.f32 %v181, %v182
    %v184 = vsub.f32 1.0, %v183
    %v185 = vmul.f32 %v182, %v184
    %v186 = vadd.f32 %v182, %v185
    %vm187 = vweird.f32 %v181
    %vm188 = vweird.f32 %v182
    %vm189 = vmor %vm187, %vm188
    %v190 = vsel %vm189, %v182, %v186
    %v191 = vand.u32 2147483647, %v181
    %vm192 = vcmp.eq.f32.partialorder %v191, 8.507059e+37
    %v193 = vand.u32 %v181, 2147483648
    %v194 = vor.u32 1.1754944e-38, %v193
    %v195 = vsel %vm192, %v194, %v190
    %v196 = vmul.f32 %v171, %v195
    %v197 = vmin.f32 %v196, 1.0
    %v198 = vmax.f32 %v197, -1.0
    %v199 = vadd.f32 %v158, 1.0
    %v200 = vadd.f32 %v198, 1.0
    %v201 = vmul.f32 %v115, %v199
    %v202 = vmul.f32 %v116, %v200
    %v203 = vld [vmem:[#allocation2] sm:$0xff]
    %v204 = vld [vmem:[#allocation2 + $0x8] sm:$0xff]
    %v205 = vld [vmem:[#allocation8] sm:$0xff]
    %v206 = vld [vmem:[#allocation8 + $0x8] sm:$0xff]
    %v207 = vld [vmem:[#allocation8 + $0x10] sm:$0xff]
    %v208 = vld [vmem:[#allocation8 + $0x18] sm:$0xff]
    %v209 = vld [vmem:[#allocation8 + $0x20] sm:$0xff]
    %v210 = vld [vmem:[#allocation8 + $0x28] sm:$0xff]
    %v211 = vld [vmem:[#allocation8 + $0x30] sm:$0xff]
    %v212 = vld [vmem:[#allocation8 + $0x38] sm:$0xff]
    %v213 = vld [vmem:[#allocation8 + $0x40] sm:$0xff]
    %v214 = vld [vmem:[#allocation8 + $0x48] sm:$0xff]
    %v215 = vld [vmem:[#allocation8 + $0x50] sm:$0xff]
    %v216 = vld [vmem:[#allocation8 + $0x58] sm:$0xff]
    %v217 = vld [vmem:[#allocation8 + $0x60] sm:$0xff]
    %v218 = vld [vmem:[#allocation8 + $0x68] sm:$0xff]
    %v219 = vld [vmem:[#allocation8 + $0x70] sm:$0xff]
    %v220 = vld [vmem:[#allocation8 + $0x78] sm:$0xff]
    %221 = vmatpush.msra.mxu0 %v220
    %222 = vmatpush.msra.mxu0 %v219
    %223 = vmatpush.msra.mxu0 %v218
    %224 = vmatpush.msra.mxu0 %v217
    %225 = vmatpush.msra.mxu0 %v216
    %226 = vmatpush.msra.mxu0 %v215
    %227 = vmatpush.msra.mxu0 %v214
    %228 = vmatpush.msra.mxu0 %v213
    %229 = vmatpush.msra.mxu0 %v212
    %230 = vmatpush.msra.mxu0 %v211
    %231 = vmatpush.msra.mxu0 %v210
    %232 = vmatpush.msra.mxu0 %v209
    %233 = vmatpush.msra.mxu0 %v208
    %234 = vmatpush.msra.mxu0 %v207
    %235 = vmatpush.msra.mxu0 %v206
    %236 = vmatpush.msra.mxu0 %v205
    %237 = vmatmul.f32.gmra.mxu0 %v201
    %v238 = vpop.f32.mrf.mxu0
    %v239 = vadd.f32 0.0, %v238
    %240 = vmatmul.f32.gmra.mxu0 %v202
    %v241 = vpop.f32.mrf.mxu0
    %v242 = vadd.f32 0.0, %v241
    %243 = vdwg.mxu0
    %v244 = vadd.f32 %v203, %v239
    %v245 = vadd.f32 %v204, %v242
    %246 = vst [vmem:[#allocation2] sm:$0xff] %v244
    %247 = vst [vmem:[#allocation2 + $0x8] sm:$0xff] %v245
    %v248 = vld [vmem:[#allocation2] sm:$0xff]
    %v249 = vld [vmem:[#allocation2 + $0x8] sm:$0xff]
    %v250 = vld [vmem:[%s4] sm:$0x1]
    %v252 = vperm.slane %v250, 0
    %v254 = vadd.f32 %v248, %v252
    %v255 = vadd.f32 %v249, %v252
    %256 = vst [vmem:[#allocation9] sm:$0xff] %v254
    %257 = vst [vmem:[#allocation9 + $0x8] sm:$0xff] %v255
    // Predicated region
    $region34: #{tpu_custom_call.1} parent=1 // pred_check
      _
    $region35: #{tpu_custom_call.1} parent=1 // pred_check_branch
      %259 = sbr.rel (0) target = $region37
    $region36: #{tpu_custom_call.1} parent=1 // pred_region
      %261 = vsyncadd [#allocation5], 0
      %s262 = sshll.u32 [#allocation9], 4
      %s263 = int_to_ptr.vmem [resolvable:$true] %s262
      %s264 = sshll.u32 %s5, 4
      %s265 = int_to_ptr.hbm [resolvable:$true] %s264
      %270 = dma.vmem_to_hbm [thread:$0]  %s263, 256, %s265, [#allocation5], 128, 128, 8
    $region37: #{tpu_custom_call.1} parent=1 // pred_fallthru
      _
    // Predicated region
    $region38: #{tpu_custom_call.1} parent=1 // pred_check
      _
    $region39: #{tpu_custom_call.1} parent=1 // pred_check_branch
      %272 = sbr.rel (0) target = $region41
    $region40: #{tpu_custom_call.1} parent=1 // pred_region
      %274 = dma.done [#allocation5], 256
    $region41: #{tpu_custom_call.1} parent=1 // pred_fallthru
      _
    %275 = vsyncpa [#allocation4], 1
    %276 = vsyncpa [#allocation7], 1
    %277 = vsyncpa [#allocation5], 1

</llo_original>
